<compile_context>
chip_gen: v5e
topology: v5e:2x2
jax: 0.10.0
libtpu: 0.0.40
codegen_flags: <defaults>
</compile_context>

<pallas_src>
import functools

import jax
import jax.numpy as jnp
from jax.experimental import pallas as pl
from jax.experimental.pallas import tpu as pltpu


# ----------------------------- helpers ------------------------------------- #

def _round_up(x, m):
    return ((x + m - 1) // m) * m


def _pick_tile(n, prefs):
    for t in prefs:
        if n % t == 0:
            return t
    return n


def _pad2(a, shape):
    out = jnp.zeros(shape, a.dtype)
    return out.at[: a.shape[0], : a.shape[1]].set(a)


def _vmem_capacity():
    try:
        return int(pltpu.get_tpu_info().vmem_capacity_bytes)
    except Exception:
        return 64 << 20          # conservative (v7x per-TC VMEM)


def _vmem_limit(tm, tk, hp, h2p, n_pad, resident_h, capacity):
    adj = 3 * tm * tk * 2                              # Buffered(3), bf16
    h_in = (2 * n_pad * hp * 2) if resident_h else (2 * tk * hp * 2)
    weights = 2 * (hp * h2p * 2 + h2p * hp * 2 + h2p * 4 + hp * 4)
    out = 2 * tm * hp * 2                              # bf16 output tile
    acc = tm * hp * 4                                  # f32 accumulator scratch
    est = adj + h_in + weights + out + acc + (4 << 20)
    cap = int(capacity * 0.82)
    return int(min(max(est, 16 << 20), cap))


def _adj_spec(tm, tk):
    index_map = lambda i, k: (i, k)
    # Triple-buffer the adjacency stream so the MLP epilogue bubble is hidden.
    if hasattr(pl, "Buffered"):
        try:
            return pl.BlockSpec((tm, tk), index_map, pipeline_mode=pl.Buffered(3))
        except TypeError:
            pass
    return pl.BlockSpec((tm, tk), index_map)


# ----------------------------- kernels ------------------------------------- #

def linear_kernel(x_ref, w_ref, b_ref, o_ref):
    # o = x @ W + b  (row-tiled, lane-dense output), bf16 output for layer 0.
    o_ref[...] = (
        jnp.dot(x_ref[...], w_ref[...], preferred_element_type=jnp.float32)
        + b_ref[...]
    ).astype(o_ref.dtype)


def gin_layer_kernel(adj_ref, h_ref, w1_ref, b1_ref, w2_ref, b2_ref,
                     o_ref, acc_ref, *, tk, apply_relu, resident_h):
    k = pl.program_id(1)

    @pl.when(k == 0)
    def _():
        acc_ref[...] = jnp.zeros_like(acc_ref)

    # sum aggregation + self term: acc[i] += A'[i, k-block] @ h[k-block]
    if resident_h:
        start = pl.multiple_of(k * tk, tk)
        h_blk = h_ref[pl.ds(start, tk), :]
    else:
        h_blk = h_ref[...]
    acc_ref[...] += jnp.dot(adj_ref[...], h_blk,
                            preferred_element_type=jnp.float32)

    # epilogue: Linear (with folded eval-BN) -> ReLU -> Linear [-> ReLU]
    @pl.when(k == pl.num_programs(1) - 1)
    def _():
        m = acc_ref[...].astype(jnp.bfloat16)
        z = jnp.dot(m, w1_ref[...],
                    preferred_element_type=jnp.float32) + b1_ref[...]
        z = jnp.maximum(z, 0.0)
        out = jnp.dot(z.astype(jnp.bfloat16), w2_ref[...],
                      preferred_element_type=jnp.float32) + b2_ref[...]
        if apply_relu:   # inter-layer F.relu (dropout with p=0.0 is identity)
            out = jnp.maximum(out, 0.0)
        o_ref[...] = out.astype(o_ref.dtype)


# ----------------------------- wrappers ------------------------------------ #

def pallas_linear(x, w, b, *, tm):
    n_pad, din = x.shape
    dout = w.shape[1]
    return pl.pallas_call(
        linear_kernel,
        out_shape=jax.ShapeDtypeStruct((n_pad, dout), jnp.bfloat16),
        grid_spec=pltpu.PrefetchScalarGridSpec(
            num_scalar_prefetch=0,
            grid=(n_pad // tm,),
            in_specs=[
                pl.BlockSpec((tm, din), lambda i: (i, 0)),
                pl.BlockSpec((din, dout), lambda i: (0, 0)),
                pl.BlockSpec((1, dout), lambda i: (0, 0)),
            ],
            out_specs=pl.BlockSpec((tm, dout), lambda i: (i, 0)),
        ),
        compiler_params=pltpu.CompilerParams(
            dimension_semantics=("parallel",),
            vmem_limit_bytes=32 << 20),
    )(x, w, b)


def pallas_gin_layer(adj, h, w1, b1, w2, b2, *, apply_relu, tm, tk,
                     resident_h, vmem_bytes):
    n_pad, hp = h.shape
    h2p = w1.shape[1]
    kern = functools.partial(gin_layer_kernel, tk=tk, apply_relu=apply_relu,
                             resident_h=resident_h)
    if resident_h:
        # full h resident in VMEM for the whole layer -> no per-row-tile restream
        h_spec = pl.BlockSpec((n_pad, hp), lambda i, k: (0, 0))
    else:
        h_spec = pl.BlockSpec((tk, hp), lambda i, k: (k, 0))
    return pl.pallas_call(
        kern,
        out_shape=jax.ShapeDtypeStruct((n_pad, hp), jnp.bfloat16),
        grid_spec=pltpu.PrefetchScalarGridSpec(
            num_scalar_prefetch=0,
            grid=(n_pad // tm, n_pad // tk),   # (row tiles, contraction tiles)
            in_specs=[
                _adj_spec(tm, tk),                                # A' (bf16)
                h_spec,                                           # h (bf16)
                pl.BlockSpec((hp, h2p), lambda i, k: (0, 0)),     # w1 (BN folded, bf16)
                pl.BlockSpec((1, h2p), lambda i, k: (0, 0)),      # b1 (BN folded, f32)
                pl.BlockSpec((h2p, hp), lambda i, k: (0, 0)),     # w2 (bf16)
                pl.BlockSpec((1, hp), lambda i, k: (0, 0)),       # b2 (f32)
            ],
            out_specs=pl.BlockSpec((tm, hp), lambda i, k: (i, 0)),
            scratch_shapes=[pltpu.VMEM((tm, hp), jnp.float32)],
        ),
        compiler_params=pltpu.CompilerParams(
            dimension_semantics=("parallel", "arbitrary"),
            vmem_limit_bytes=vmem_bytes),
    )(adj, h, w1, b1, w2, b2)


def gin_forward(x, edge_index, params, num_layers, *, eps=0.0, bn_eps=1e-5):
    """Pallas GIN forward. x: (N, input_dim) f32, edge_index: (2, E) int32."""
    n, input_dim = x.shape
    hidden = params["fn_w"].shape[1]

    hp = _round_up(hidden, 128)
    h2p = _round_up(2 * hidden, 128)
    din_pad = _round_up(input_dim, 128)
    n_pad = _round_up(max(n, 8), 128)

    capacity = _vmem_capacity()
    if capacity >= (100 << 20):                      # v5e / v6e (128 MiB VMEM)
        tm = _pick_tile(n_pad, (512, 256, 128))
        tk = _pick_tile(n_pad, (1024, 512, 256, 128))
    else:                                            # v7x (64 MiB per-TC VMEM)
        tm = _pick_tile(n_pad, (256, 128))
        tk = _pick_tile(n_pad, (512, 256, 128))

    resident_h = (2 * n_pad * hp * 2) <= (capacity // 4)
    vmem_bytes = _vmem_limit(tm, tk, hp, h2p, n_pad, resident_h, capacity)

    # A' = A + (1+eps) I, built directly as bf16 (edge counts exact up to 256,
    # no dense f32 N^2 intermediate).  A'[dst, src] = #edges src->dst.
    src, dst = edge_index[0], edge_index[1]
    diag = jnp.arange(n, dtype=jnp.int32)
    adj = (jnp.zeros((n_pad, n_pad), jnp.bfloat16)
           .at[dst, src].add(1.0)
           .at[diag, diag].add(1.0 + eps))

    # zero-padded (mathematically inert) lane-dense parameters / inputs
    x_pad = jnp.zeros((n_pad, din_pad), jnp.float32).at[:n, :input_dim].set(x)
    fn_w = _pad2(params["fn_w"], (din_pad, hp))
    fn_b = _pad2(params["fn_b"], (1, hp))

    h = pallas_linear(x_pad, fn_w, fn_b, tm=tm)          # h_list[0] (bf16)

    for layer in range(num_layers):
        p = params["convs"][layer]
        # fold eval-mode BatchNorm1d into the first Linear of nn_seq
        scale = p["gamma"] / jnp.sqrt(p["var"] + bn_eps)
        w1f = _pad2(p["w1"] * scale, (hp, h2p)).astype(jnp.bfloat16)
        b1f = _pad2((p["b1"] - p["mean"]) * scale + p["beta"], (1, h2p))
        w2 = _pad2(p["w2"], (h2p, hp)).astype(jnp.bfloat16)
        b2 = _pad2(p["b2"], (1, hp))
        h = pallas_gin_layer(adj, h, w1f, b1f, w2, b2,
                             apply_relu=(layer < num_layers - 1),
                             tm=tm, tk=tk, resident_h=resident_h,
                             vmem_bytes=vmem_bytes)

    # drop_ratio=0.0 / eval -> dropout identity; global_readout / mlp_head off.
    return h[:n, :hidden].astype(jnp.float32)


# --------------------------- param init / reference ------------------------ #

def _linear_init(key, fan_in, fan_out):
    kw, kb = jax.random.split(key)
    bound = 1.0 / jnp.sqrt(jnp.float32(fan_in))
    w = jax.random.uniform(kw, (fan_in, fan_out), jnp.float32, -bound, bound)
    b = jax.random.uniform(kb, (1, fan_out), jnp.float32, -bound, bound)
    return w, b


def init_params(key, input_dim, hidden_dim, num_layers):
    keys = jax.random.split(key, 1 + 2 * num_layers)
    fn_w, fn_b = _linear_init(keys[0], input_dim, hidden_dim)
    convs = []
    for layer in range(num_layers):
        w1, b1 = _linear_init(keys[1 + 2 * layer], hidden_dim, 2 * hidden_dim)
        w2, b2 = _linear_init(keys[2 + 2 * layer], 2 * hidden_dim, hidden_dim)
        convs.append(dict(
            w1=w1, b1=b1, w2=w2, b2=b2,
            # BatchNorm1d(2*hidden_dim) at __init__ (eval mode)
            gamma=jnp.ones((1, 2 * hidden_dim), jnp.float32),
            beta=jnp.zeros((1, 2 * hidden_dim), jnp.float32),
            mean=jnp.zeros((1, 2 * hidden_dim), jnp.float32),
            var=jnp.ones((1, 2 * hidden_dim), jnp.float32),
        ))
    return dict(fn_w=fn_w, fn_b=fn_b, convs=convs)


def gin_reference(x, edge_index, params, num_layers, bn_eps=1e-5):
    n = x.shape[0]
    src, dst = edge_index[0], edge_index[1]
    adj = jnp.zeros((n, n), jnp.float32).at[dst, src].add(1.0)
    h = x @ params["fn_w"] + params["fn_b"]
    for layer in range(num_layers):
        p = params["convs"][layer]
        m = h + adj @ h
        z = m @ p["w1"] + p["b1"]
        z = p["gamma"] * (z - p["mean"]) / jnp.sqrt(p["var"] + bn_eps) + p["beta"]
        z = jnp.maximum(z, 0.0)
        out = z @ p["w2"] + p["b2"]
        if layer < num_layers - 1:
            out = jnp.maximum(out, 0.0)
        h = out
    return h


# ----------------------------------- main ---------------------------------- #

if __name__ == "__main__":
    N, INPUT_DIM, HIDDEN_DIM, NUM_LAYERS = 16, 8, 32, 2

    key = jax.random.PRNGKey(0)
    kx, kp = jax.random.split(key)

    x = jax.random.normal(kx, (N, INPUT_DIM), jnp.float32)

    # small deterministic graph: undirected ring over N nodes
    s = jnp.arange(N, dtype=jnp.int32)
    d = (s + 1) % N
    edge_index = jnp.concatenate(
        [jnp.stack([s, d]), jnp.stack([d, s])], axis=1)        # (2, 2N)

    params = init_params(kp, INPUT_DIM, HIDDEN_DIM, NUM_LAYERS)

    out = gin_forward(x, edge_index, params, NUM_LAYERS)
    out = jax.block_until_ready(out)

    ref = gin_reference(x, edge_index, params, NUM_LAYERS)
    assert out.shape == (N, HIDDEN_DIM)

    # bf16 activation/weight path -> loosened tolerance vs. the f32 reference
    # (precision choice, not a bug).
    err = float(jnp.max(jnp.abs(out - ref)))
    tol = 5e-2 * (1.0 + float(jnp.max(jnp.abs(ref))))
    assert err <= tol, f"max abs diff {err} > tol {tol}"

    print("KERNEL_OK")
</pallas_src>

<mosaic_0001>
module attributes {stable_mosaic.version = 11 : i64} {
  func.func @linear_kernel(%arg0: i32, %arg1: memref<128x128xf32, #tpu.memory_space<vmem>>, %arg2: memref<128x128xf32, #tpu.memory_space<vmem>>, %arg3: memref<1x128xf32, #tpu.memory_space<vmem>>, %arg4: memref<128x128xbf16, #tpu.memory_space<vmem>>) attributes {dimension_semantics = [#tpu.dimension_semantics<parallel>], iteration_bounds = array<i64: 1>, scalar_prefetch = 0 : i64, scratch_operands = 0 : i64, tpu.core_type = #tpu.core_type<tc>, window_params = [{transform_indices = @transform_0, window_bounds = array<i64: 128, 128>}, {pipeline_mode = #tpu.pipeline_mode<synchronous>, transform_indices = @transform_1, window_bounds = array<i64: 128, 128>}, {pipeline_mode = #tpu.pipeline_mode<synchronous>, transform_indices = @transform_2, window_bounds = array<i64: 1, 128>}, {transform_indices = @transform_3, window_bounds = array<i64: 128, 128>}]} {
    %c0 = arith.constant 0 : index
    %c0_0 = arith.constant 0 : index
    %0 = vector.load %arg1[%c0, %c0_0] : memref<128x128xf32, #tpu.memory_space<vmem>>, vector<128x128xf32>
    %c0_1 = arith.constant 0 : index
    %c0_2 = arith.constant 0 : index
    %1 = vector.load %arg2[%c0_1, %c0_2] : memref<128x128xf32, #tpu.memory_space<vmem>>, vector<128x128xf32>
    %cst = arith.constant dense<0.000000e+00> : vector<128x128xf32>
    %2 = tpu.matmul %0, %1, %cst {dimension_numbers = #tpu.dot_dimension_numbers<[1], [0], [0], [1], [0, 0, 1, 1], [], []>} : vector<128x128xf32>, vector<128x128xf32>, vector<128x128xf32> -> vector<128x128xf32>
    %c0_3 = arith.constant 0 : index
    %c0_4 = arith.constant 0 : index
    %3 = vector.load %arg3[%c0_3, %c0_4] : memref<1x128xf32, #tpu.memory_space<vmem>>, vector<1x128xf32>
    %4 = vector.broadcast %3 : vector<1x128xf32> to vector<128x128xf32>
    %5 = arith.addf %2, %4 : vector<128x128xf32>
    %6 = arith.truncf %5 : vector<128x128xf32> to vector<128x128xbf16>
    %c0_5 = arith.constant 0 : index
    %c0_6 = arith.constant 0 : index
    %7 = vector.load %arg4[%c0_5, %c0_6] : memref<128x128xbf16, #tpu.memory_space<vmem>>, vector<128x128xbf16>
    tpu.vector_store %arg4[%c0_5, %c0_6], %6 {strides = array<i32>} : memref<128x128xbf16, #tpu.memory_space<vmem>>, vector<128x128xbf16>,
    return
  }
  func.func @transform_0(%arg0: i32) -> (i32, i32) {
    %c0_i32 = arith.constant 0 : i32
    %c0_i32_0 = arith.constant 0 : i32
    return %arg0, %c0_i32 : i32, i32
  }
  func.func @transform_1(%arg0: i32) -> (i32, i32) {
    %c0_i32 = arith.constant 0 : i32
    %c0_i32_0 = arith.constant 0 : i32
    %c0_i32_1 = arith.constant 0 : i32
    return %c0_i32, %c0_i32_0 : i32, i32
  }
  func.func @transform_2(%arg0: i32) -> (i32, i32) {
    %c0_i32 = arith.constant 0 : i32
    %c0_i32_0 = arith.constant 0 : i32
    %c0_i32_1 = arith.constant 0 : i32
    return %c0_i32, %c0_i32_0 : i32, i32
  }
  func.func @transform_3(%arg0: i32) -> (i32, i32) {
    %c0_i32 = arith.constant 0 : i32
    %c0_i32_0 = arith.constant 0 : i32
    return %arg0, %c0_i32 : i32, i32
  }
}

</mosaic_0001>

<llo_original>
// kernel: tpu_custom_call.1
$region0: #{tpu_custom_call.1}
  #allocation0 [shape = 'u32[]', space=smem, size = 0x4, offset = 0x4, fixed_abs, tag = 'smem constant byte address 0x4 - core index']
  #allocation1 [shape = 'u32[72,128]{1,0:T(1,128)}', space=vmem, size = 0x9000, scoped, tag = 'internal scratch']
  %s0 = inlined_call_operand.hbm [shape: f32[128,128], index: 0, kind: input, shape index: {}]
  %s1 = inlined_call_operand.hbm [shape: f32[128,128], index: 1, kind: input, shape index: {}]
  %s2 = inlined_call_operand.vmem [shape: f32[1,128], index: 2, kind: input, shape index: {}]
  %s3 = inlined_call_operand.hbm [shape: bf16[128,128], index: 3, kind: output, shape index: {}]
  %s4 = sld [smem:[#allocation0]]
  $region30: #{tpu_custom_call.1} parent=0
    _
  %s6 = ssub.s32 1, %s4
  %s7 = scalar_select 0, %s6, %s4
  $region1: #{tpu_custom_call.1} parent=0
    #allocation2 [shape = 'u8[65536]{0}', space=vmem, size = 0x10000, scoped, tag = 'input window, operand 0, single buffered']
    #allocation3 [shape = 's32[1]{0}', space=sflag, size = 0x4, scoped, tag = 'scoped memory for tpu_custom_call.1']
    #allocation4 [shape = 's32[1]{0}', space=sflag, size = 0x4, scoped, tag = 'scoped memory for tpu_custom_call.1']
    #allocation5 [shape = 'u8[65536]{0}', space=vmem, size = 0x10000, scoped, tag = 'input window, operand 1, single buffered']
    #allocation6 [shape = 's32[1]{0}', space=sflag, size = 0x4, scoped, tag = 'scoped memory for tpu_custom_call.1']
    #allocation7 [shape = 'u8[32768]{0}', space=vmem, size = 0x8000, scoped, tag = 'output window, operand 0, single buffered']
    %8 = vsyncpa [#allocation3], 0
    %9 = vsyncpa [#allocation6], 0
    %10 = vsyncpa [#allocation4], 0
    // Predicated region
    $region2: #{tpu_custom_call.1} parent=1 // pred_check
      _
    $region3: #{tpu_custom_call.1} parent=1 // pred_check_branch
      %12 = sbr.rel (0) target = $region5
    $region4: #{tpu_custom_call.1} parent=1 // pred_region
      %14 = vsyncadd [#allocation3], 0
      %s15 = sshll.u32 %s0, 4
      %s16 = int_to_ptr.hbm [resolvable:$true] %s15
      %s17 = sshll.u32 [#allocation2], 4
      %s18 = int_to_ptr.vmem [resolvable:$true] %s17
      %23 = dma.hbm_to_vmem [thread:$0]  %s16, 2048, %s18, [#allocation3], 128, 128, 8
    $region5: #{tpu_custom_call.1} parent=1 // pred_fallthru
      _
    // Predicated region
    $region6: #{tpu_custom_call.1} parent=1 // pred_check
      _
    $region7: #{tpu_custom_call.1} parent=1 // pred_check_branch
      %25 = sbr.rel (0) target = $region9
    $region8: #{tpu_custom_call.1} parent=1 // pred_region
      %27 = vsyncadd [#allocation6], 0
      %s28 = sshll.u32 %s1, 4
      %s29 = int_to_ptr.hbm [resolvable:$true] %s28
      %s30 = sshll.u32 [#allocation5], 4
      %s31 = int_to_ptr.vmem [resolvable:$true] %s30
      %36 = dma.hbm_to_vmem [thread:$0]  %s29, 2048, %s31, [#allocation6], 128, 128, 8
    $region9: #{tpu_custom_call.1} parent=1 // pred_fallthru
      _
    // Predicated region
    $region10: #{tpu_custom_call.1} parent=1 // pred_check
      _
    $region11: #{tpu_custom_call.1} parent=1 // pred_check_branch
      %38 = sbr.rel (0) target = $region13
    $region12: #{tpu_custom_call.1} parent=1 // pred_region
      _
    $region13: #{tpu_custom_call.1} parent=1 // pred_fallthru
      _
    // Predicated region
    $region14: #{tpu_custom_call.1} parent=1 // pred_check
      _
    $region15: #{tpu_custom_call.1} parent=1 // pred_check_branch
      %40 = sbr.rel (0) target = $region17
    $region16: #{tpu_custom_call.1} parent=1 // pred_region
      %42 = dma.done [#allocation3], 2048
    $region17: #{tpu_custom_call.1} parent=1 // pred_fallthru
      _
    // Predicated region
    $region18: #{tpu_custom_call.1} parent=1 // pred_check
      _
    $region19: #{tpu_custom_call.1} parent=1 // pred_check_branch
      %44 = sbr.rel (0) target = $region21
    $region20: #{tpu_custom_call.1} parent=1 // pred_region
      %46 = dma.done [#allocation6], 2048
    $region21: #{tpu_custom_call.1} parent=1 // pred_fallthru
      _
    %v47 = vld [vmem:[#allocation2] sm:$0xff]
    %v48 = vld [vmem:[#allocation2 + $0x8] sm:$0xff]
    %v49 = vld [vmem:[#allocation2 + $0x10] sm:$0xff]
    %v50 = vld [vmem:[#allocation2 + $0x18] sm:$0xff]
    %v51 = vld [vmem:[#allocation2 + $0x20] sm:$0xff]
    %v52 = vld [vmem:[#allocation2 + $0x28] sm:$0xff]
    %v53 = vld [vmem:[#allocation2 + $0x30] sm:$0xff]
    %v54 = vld [vmem:[#allocation2 + $0x38] sm:$0xff]
    %v55 = vld [vmem:[#allocation2 + $0x40] sm:$0xff]
    %v56 = vld [vmem:[#allocation2 + $0x48] sm:$0xff]
    %v57 = vld [vmem:[#allocation2 + $0x50] sm:$0xff]
    %v58 = vld [vmem:[#allocation2 + $0x58] sm:$0xff]
    %v59 = vld [vmem:[#allocation2 + $0x60] sm:$0xff]
    %v60 = vld [vmem:[#allocation2 + $0x68] sm:$0xff]
    %v61 = vld [vmem:[#allocation2 + $0x70] sm:$0xff]
    %v62 = vld [vmem:[#allocation2 + $0x78] sm:$0xff]
    %v63 = vld [vmem:[#allocation5] sm:$0xff]
    %v64 = vld [vmem:[#allocation5 + $0x8] sm:$0xff]
    %v65 = vld [vmem:[#allocation5 + $0x10] sm:$0xff]
    %v66 = vld [vmem:[#allocation5 + $0x18] sm:$0xff]
    %v67 = vld [vmem:[#allocation5 + $0x20] sm:$0xff]
    %v68 = vld [vmem:[#allocation5 + $0x28] sm:$0xff]
    %v69 = vld [vmem:[#allocation5 + $0x30] sm:$0xff]
    %v70 = vld [vmem:[#allocation5 + $0x38] sm:$0xff]
    %v71 = vld [vmem:[#allocation5 + $0x40] sm:$0xff]
    %v72 = vld [vmem:[#allocation5 + $0x48] sm:$0xff]
    %v73 = vld [vmem:[#allocation5 + $0x50] sm:$0xff]
    %v74 = vld [vmem:[#allocation5 + $0x58] sm:$0xff]
    %v75 = vld [vmem:[#allocation5 + $0x60] sm:$0xff]
    %v76 = vld [vmem:[#allocation5 + $0x68] sm:$0xff]
    %v77 = vld [vmem:[#allocation5 + $0x70] sm:$0xff]
    %v78 = vld [vmem:[#allocation5 + $0x78] sm:$0xff]
    %v79 = vld [vmem:[%s2] sm:$0x1]
    %v81 = vperm.slane %v79, 0
    %83 = vmatpush.msra.mxu0 %v78
    %84 = vmatpush.msra.mxu0 %v77
    %85 = vmatpush.msra.mxu0 %v76
    %86 = vmatpush.msra.mxu0 %v75
    %87 = vmatpush.msra.mxu0 %v74
    %88 = vmatpush.msra.mxu0 %v73
    %89 = vmatpush.msra.mxu0 %v72
    %90 = vmatpush.msra.mxu0 %v71
    %91 = vmatpush.msra.mxu0 %v70
    %92 = vmatpush.msra.mxu0 %v69
    %93 = vmatpush.msra.mxu0 %v68
    %94 = vmatpush.msra.mxu0 %v67
    %95 = vmatpush.msra.mxu0 %v66
    %96 = vmatpush.msra.mxu0 %v65
    %97 = vmatpush.msra.mxu0 %v64
    %98 = vmatpush.msra.mxu0 %v63
    %99 = vmatmul.f32.gmra.mxu0 %v47
    %v100 = vpop.f32.mrf.mxu0
    %v101 = vadd.f32 %v81, %v100
    %102 = vmatmul.f32.gmra.mxu0 %v48
    %v103 = vpop.f32.mrf.mxu0
    %v104 = vadd.f32 %v81, %v103
    %105 = vmatmul.f32.gmra.mxu0 %v49
    %v106 = vpop.f32.mrf.mxu0
    %v107 = vadd.f32 %v81, %v106
    %108 = vmatmul.f32.gmra.mxu0 %v50
    %v109 = vpop.f32.mrf.mxu0
    %v110 = vadd.f32 %v81, %v109
    %111 = vmatmul.f32.gmra.mxu0 %v51
    %v112 = vpop.f32.mrf.mxu0
    %v113 = vadd.f32 %v81, %v112
    %114 = vmatmul.f32.gmra.mxu0 %v52
    %v115 = vpop.f32.mrf.mxu0
    %v116 = vadd.f32 %v81, %v115
    %117 = vmatmul.f32.gmra.mxu0 %v53
    %v118 = vpop.f32.mrf.mxu0
    %v119 = vadd.f32 %v81, %v118
    %120 = vmatmul.f32.gmra.mxu0 %v54
    %v121 = vpop.f32.mrf.mxu0
    %v122 = vadd.f32 %v81, %v121
    %123 = vmatmul.f32.gmra.mxu0 %v55
    %v124 = vpop.f32.mrf.mxu0
    %v125 = vadd.f32 %v81, %v124
    %126 = vmatmul.f32.gmra.mxu0 %v56
    %v127 = vpop.f32.mrf.mxu0
    %v128 = vadd.f32 %v81, %v127
    %129 = vmatmul.f32.gmra.mxu0 %v57
    %v130 = vpop.f32.mrf.mxu0
    %v131 = vadd.f32 %v81, %v130
    %132 = vmatmul.f32.gmra.mxu0 %v58
    %v133 = vpop.f32.mrf.mxu0
    %v134 = vadd.f32 %v81, %v133
    %135 = vmatmul.f32.gmra.mxu0 %v59
    %v136 = vpop.f32.mrf.mxu0
    %v137 = vadd.f32 %v81, %v136
    %138 = vmatmul.f32.gmra.mxu0 %v60
    %v139 = vpop.f32.mrf.mxu0
    %v140 = vadd.f32 %v81, %v139
    %141 = vmatmul.f32.gmra.mxu0 %v61
    %v142 = vpop.f32.mrf.mxu0
    %v143 = vadd.f32 %v81, %v142
    %144 = vmatmul.f32.gmra.mxu0 %v62
    %v145 = vpop.f32.mrf.mxu0
    %v146 = vadd.f32 %v81, %v145
    %147 = vdwg.mxu0
    %v148 = vpack.c.bf16 %v101, %v101
    %v149 = vpack.c.bf16 %v104, %v104
    %v150 = vpack.c.bf16 %v107, %v107
    %v151 = vpack.c.bf16 %v110, %v110
    %v152 = vpack.c.bf16 %v113, %v113
    %v153 = vpack.c.bf16 %v116, %v116
    %v154 = vpack.c.bf16 %v119, %v119
    %v155 = vpack.c.bf16 %v122, %v122
    %v156 = vpack.c.bf16 %v125, %v125
    %v157 = vpack.c.bf16 %v128, %v128
    %v158 = vpack.c.bf16 %v131, %v131
    %v159 = vpack.c.bf16 %v134, %v134
    %v160 = vpack.c.bf16 %v137, %v137
    %v161 = vpack.c.bf16 %v140, %v140
    %v162 = vpack.c.bf16 %v143, %v143
    %v163 = vpack.c.bf16 %v146, %v146
    %164 = vst [vmem:[#allocation7] sm:$0xf] %v148
    %165 = vst [vmem:[#allocation7 + $0x4] sm:$0xf] %v149
    %166 = vst [vmem:[#allocation7 + $0x8] sm:$0xf] %v150
    %167 = vst [vmem:[#allocation7 + $0xc] sm:$0xf] %v151
    %168 = vst [vmem:[#allocation7 + $0x10] sm:$0xf] %v152
    %169 = vst [vmem:[#allocation7 + $0x14] sm:$0xf] %v153
    %170 = vst [vmem:[#allocation7 + $0x18] sm:$0xf] %v154
    %171 = vst [vmem:[#allocation7 + $0x1c] sm:$0xf] %v155
    %172 = vst [vmem:[#allocation7 + $0x20] sm:$0xf] %v156
    %173 = vst [vmem:[#allocation7 + $0x24] sm:$0xf] %v157
    %174 = vst [vmem:[#allocation7 + $0x28] sm:$0xf] %v158
    %175 = vst [vmem:[#allocation7 + $0x2c] sm:$0xf] %v159
    %176 = vst [vmem:[#allocation7 + $0x30] sm:$0xf] %v160
    %177 = vst [vmem:[#allocation7 + $0x34] sm:$0xf] %v161
    %178 = vst [vmem:[#allocation7 + $0x38] sm:$0xf] %v162
    %179 = vst [vmem:[#allocation7 + $0x3c] sm:$0xf] %v163
    // Predicated region
    $region22: #{tpu_custom_call.1} parent=1 // pred_check
      _
    $region23: #{tpu_custom_call.1} parent=1 // pred_check_branch
      %181 = sbr.rel (0) target = $region25
    $region24: #{tpu_custom_call.1} parent=1 // pred_region
      %183 = vsyncadd [#allocation4], 0
      %s184 = sshll.u32 [#allocation7], 4
      %s185 = int_to_ptr.vmem [resolvable:$true] %s184
      %s186 = sshll.u32 %s3, 4
      %s187 = int_to_ptr.hbm [resolvable:$true] %s186
      %192 = dma.vmem_to_hbm [thread:$0]  %s185, 1024, %s187, [#allocation4], 64, 64, 4
    $region25: #{tpu_custom_call.1} parent=1 // pred_fallthru
      _
    // Predicated region
    $region26: #{tpu_custom_call.1} parent=1 // pred_check
      _
    $region27: #{tpu_custom_call.1} parent=1 // pred_check_branch
      %194 = sbr.rel (0) target = $region29
    $region28: #{tpu_custom_call.1} parent=1 // pred_region
      %196 = dma.done [#allocation4], 1024
    $region29: #{tpu_custom_call.1} parent=1 // pred_fallthru
      _
    %197 = vsyncpa [#allocation3], 1
    %198 = vsyncpa [#allocation6], 1
    %199 = vsyncpa [#allocation4], 1

</llo_original>
